<compile_context>
chip_gen: v7x
topology: tpu7x:2x2x1
jax: 0.10.0
libtpu: 0.0.40
codegen_flags: <defaults>
</compile_context>

<pallas_src>
import jax
import jax.numpy as jnp
from jax import lax
from jax.experimental import pallas as pl
from jax.experimental.pallas import tpu as pltpu

LANES = 128
MAX_BLOCK_ROWS = 4096   # 4096 x 128 x 4 B = 2 MiB per f32 input block
NUM_CORES = 2           # leading "parallel" grid axis (used by v7x megacore)


def _round_up(x, m):
    return ((x + m - 1) // m) * m


def _make_kernel(threshold, block_rows, tile_elems, total_tiles,
                 tiles_per_core, tail_valid, need_mask):
    last_tile = total_tiles - 1

    def kernel(x1_ref, x2_ref, out_ref, acc_ref):
        c = pl.program_id(0)
        i = pl.program_id(1)

        @pl.when(i == 0)
        def _():
            acc_ref[...] = jnp.zeros_like(acc_ref)

        d = x1_ref[...].astype(jnp.float32) - x2_ref[...].astype(jnp.float32)
        sq = jnp.maximum(d * d, jnp.float32(threshold))

        if need_mask:
            # Global row-tile index; zero out elements past the real data
            # (ragged last tile and/or duplicated tiles from the 2-way split).
            g = c * tiles_per_core + i
            limit = jnp.where(
                g < last_tile, tile_elems,
                jnp.where(g == last_tile, tail_valid, 0)).astype(jnp.int32)
            eid = (lax.broadcasted_iota(jnp.int32, (block_rows, LANES), 0) * LANES
                   + lax.broadcasted_iota(jnp.int32, (block_rows, LANES), 1))
            sq = jnp.where(eid < limit, sq, jnp.float32(0.0))

        # Vector-shaped accumulation: pure VPU adds per step, no XLU reduce.
        acc_ref[...] += jnp.sum(sq.reshape(block_rows // 8, 8, LANES), axis=0)

        @pl.when(i == pl.num_programs(1) - 1)
        def _():
            out_ref[...] = jnp.sum(acc_ref[...]).reshape(1, 1, 1)

    return kernel


def smooth_mse(x1, x2, threshold=0.001):
    assert x1.shape == x2.shape
    n_real = 1
    for s in x1.shape:
        n_real *= s

    rows = pl.cdiv(n_real, LANES)
    flat1 = x1.reshape(-1)
    flat2 = x2.reshape(-1)
    if n_real % LANES != 0:
        # TODO(synk): lane-ragged sizes need a small pad copy here; avoidable with
        # 1-D blocks + in-kernel element masking, kept simple for the rare case.
        pad = rows * LANES - n_real
        flat1 = jnp.pad(flat1, (0, pad))
        flat2 = jnp.pad(flat2, (0, pad))
    x1_2d = flat1.reshape(rows, LANES)   # free bitcast reshape, original dtype
    x2_2d = flat2.reshape(rows, LANES)

    block_rows = min(MAX_BLOCK_ROWS, _round_up(rows, 8))
    tile_elems = block_rows * LANES
    total_tiles = pl.cdiv(rows, block_rows)
    tiles_per_core = pl.cdiv(total_tiles, NUM_CORES)
    tail_valid = n_real - (total_tiles - 1) * tile_elems
    need_mask = (tail_valid < tile_elems) or (NUM_CORES * tiles_per_core > total_tiles)

    def row_map(c, i):
        g = c * tiles_per_core + i
        # Clamp duplicated / overhanging tiles back in range; their contribution
        # is masked to zero inside the kernel.
        return (jnp.minimum(g, total_tiles - 1), 0)

    kernel = _make_kernel(threshold, block_rows, tile_elems, total_tiles,
                          tiles_per_core, tail_valid, need_mask)

    partial = pl.pallas_call(
        kernel,
        out_shape=jax.ShapeDtypeStruct((NUM_CORES, 1, 1), jnp.float32),
        grid_spec=pltpu.PrefetchScalarGridSpec(
            num_scalar_prefetch=0,
            grid=(NUM_CORES, tiles_per_core),
            in_specs=[
                pl.BlockSpec((block_rows, LANES), row_map),
                pl.BlockSpec((block_rows, LANES), row_map),
            ],
            out_specs=pl.BlockSpec((1, 1, 1), lambda c, i: (c, 0, 0)),
            scratch_shapes=[pltpu.VMEM((8, LANES), jnp.float32)],
        ),
        compiler_params=pltpu.CompilerParams(
            dimension_semantics=("parallel", "arbitrary"),
            vmem_limit_bytes=32 * 1024 * 1024,
        ),
    )(x1_2d, x2_2d)

    total = jnp.sum(partial)          # add the two per-core partial sums
    return total / jnp.float32(n_real)


if __name__ == "__main__":
    key = jax.random.PRNGKey(0)
    k1, k2 = jax.random.split(key)
    # NCHW, matching the PyTorch module's expected input layout.
    x1 = jax.random.normal(k1, (2, 4, 16, 16), dtype=jnp.float32)
    x2 = jax.random.normal(k2, (2, 4, 16, 16), dtype=jnp.float32)

    out = smooth_mse(x1, x2, threshold=0.001)
    out = jax.block_until_ready(out)

    # Pure-JAX reference check.
    ref = jnp.mean(jnp.maximum((x1 - x2) ** 2, 0.001))
    assert jnp.allclose(out, ref, rtol=1e-5, atol=1e-6), (out, ref)

    print("KERNEL_OK")
</pallas_src>

<mosaic_0001>
module attributes {stable_mosaic.version = 11 : i64} {
  func.func @kernel(%arg0: i32, %arg1: i32, %arg2: memref<16x128xf32, #tpu.memory_space<vmem>>, %arg3: memref<16x128xf32, #tpu.memory_space<vmem>>, %arg4: memref<1x1x1xf32, #tpu.memory_space<vmem>>, %arg5: memref<8x128xf32, #tpu.memory_space<vmem>>) attributes {dimension_semantics = [#tpu.dimension_semantics<parallel>, #tpu.dimension_semantics<arbitrary>], iteration_bounds = array<i64: 2, 1>, scalar_prefetch = 0 : i64, scratch_operands = 1 : i64, tpu.core_type = #tpu.core_type<tc>, window_params = [{transform_indices = @transform_0, window_bounds = array<i64: 16, 128>}, {transform_indices = @transform_1, window_bounds = array<i64: 16, 128>}, {transform_indices = @transform_2, window_bounds = array<i64: 1, 1, 1>}]} {
    %c0_i32 = arith.constant 0 : i32
    %0 = arith.cmpi eq, %arg1, %c0_i32 : i32
    %1 = arith.extui %0 : i1 to i32
    %c0_i32_0 = arith.constant 0 : i32
    %2 = arith.cmpi ne, %1, %c0_i32_0 : i32
    scf.if %2 {
      %cst_16 = arith.constant 0.000000e+00 : f32
      %32 = vector.broadcast %cst_16 : f32 to vector<8x128xf32>
      %c0_17 = arith.constant 0 : index
      %c0_18 = arith.constant 0 : index
      %33 = vector.load %arg5[%c0_17, %c0_18] : memref<8x128xf32, #tpu.memory_space<vmem>>, vector<8x128xf32>
      tpu.vector_store %arg5[%c0_17, %c0_18], %32 {strides = array<i32>} : memref<8x128xf32, #tpu.memory_space<vmem>>, vector<8x128xf32>,
    } else {
    }
    %c0 = arith.constant 0 : index
    %c0_1 = arith.constant 0 : index
    %3 = vector.load %arg2[%c0, %c0_1] : memref<16x128xf32, #tpu.memory_space<vmem>>, vector<16x128xf32>
    %c0_2 = arith.constant 0 : index
    %c0_3 = arith.constant 0 : index
    %4 = vector.load %arg3[%c0_2, %c0_3] : memref<16x128xf32, #tpu.memory_space<vmem>>, vector<16x128xf32>
    %5 = arith.subf %3, %4 : vector<16x128xf32>
    %6 = arith.mulf %5, %5 : vector<16x128xf32>
    %cst = arith.constant 1.000000e-03 : f32
    %7 = vector.broadcast %cst : f32 to vector<16x128xf32>
    %8 = arith.maximumf %6, %7 : vector<16x128xf32>
    %c1_i32 = arith.constant 1 : i32
    %9 = arith.muli %arg0, %c1_i32 : i32
    %10 = arith.addi %9, %arg1 : i32
    %c0_i32_4 = arith.constant 0 : i32
    %11 = arith.cmpi slt, %10, %c0_i32_4 : i32
    %c0_i32_5 = arith.constant 0 : i32
    %12 = arith.cmpi eq, %10, %c0_i32_5 : i32
    %c2048_i32 = arith.constant 2048 : i32
    %c0_i32_6 = arith.constant 0 : i32
    %13 = arith.select %12, %c2048_i32, %c0_i32_6 : i32
    %c2048_i32_7 = arith.constant 2048 : i32
    %14 = arith.select %11, %c2048_i32_7, %13 : i32
    %15 = tpu.iota {dimensions = array<i32: 0>} : vector<16x128xi32>
    %c128_i32 = arith.constant 128 : i32
    %16 = vector.broadcast %c128_i32 : i32 to vector<16x128xi32>
    %17 = arith.muli %15, %16 : vector<16x128xi32>
    %18 = tpu.iota {dimensions = array<i32: 1>} : vector<16x128xi32>
    %19 = arith.addi %17, %18 : vector<16x128xi32>
    %20 = vector.broadcast %14 : i32 to vector<16x128xi32>
    %21 = arith.cmpi slt, %19, %20 : vector<16x128xi32>
    %cst_8 = arith.constant 0.000000e+00 : f32
    %22 = vector.broadcast %cst_8 : f32 to vector<16x128xf32>
    %23 = arith.select %21, %8, %22 : vector<16x128xi1>, vector<16x128xf32>
    %c0_9 = arith.constant 0 : index
    %c0_10 = arith.constant 0 : index
    %24 = vector.load %arg5[%c0_9, %c0_10] : memref<8x128xf32, #tpu.memory_space<vmem>>, vector<8x128xf32>
    %25 = vector.shape_cast %23 : vector<16x128xf32> to vector<2x8x128xf32>
    %cst_11 = arith.constant dense<0.000000e+00> : vector<8x128xf32>
    %26 = vector.multi_reduction <add>, %25, %cst_11 [0] : vector<2x8x128xf32> to vector<8x128xf32>
    %27 = arith.addf %24, %26 : vector<8x128xf32>
    %c0_12 = arith.constant 0 : index
    %c0_13 = arith.constant 0 : index
    %28 = vector.load %arg5[%c0_12, %c0_13] : memref<8x128xf32, #tpu.memory_space<vmem>>, vector<8x128xf32>
    tpu.vector_store %arg5[%c0_12, %c0_13], %27 {strides = array<i32>} : memref<8x128xf32, #tpu.memory_space<vmem>>, vector<8x128xf32>,
    %c0_i32_14 = arith.constant 0 : i32
    %29 = arith.cmpi eq, %arg1, %c0_i32_14 : i32
    %30 = arith.extui %29 : i1 to i32
    %c0_i32_15 = arith.constant 0 : i32
    %31 = arith.cmpi ne, %30, %c0_i32_15 : i32
    scf.if %31 {
      %c0_16 = arith.constant 0 : index
      %c0_17 = arith.constant 0 : index
      %32 = vector.load %arg5[%c0_16, %c0_17] : memref<8x128xf32, #tpu.memory_space<vmem>>, vector<8x128xf32>
      %33 = vector.shape_cast %32 : vector<8x128xf32> to vector<1x8x128xf32>
      %cst_18 = arith.constant dense<0.000000e+00> : vector<1xf32>
      %34 = vector.multi_reduction <add>, %33, %cst_18 [1, 2] : vector<1x8x128xf32> to vector<1xf32>
      %35 = vector.shape_cast %34 : vector<1xf32> to vector<1x1x1xf32>
      %36 = vector.extract %35[0, 0, 0] : f32 from vector<1x1x1xf32>
      %37 = vector.broadcast %36 : f32 to vector<1x1x1xf32>
      %c0_19 = arith.constant 0 : index
      %c0_20 = arith.constant 0 : index
      %c0_21 = arith.constant 0 : index
      %38 = vector.load %arg4[%c0_19, %c0_20, %c0_21] : memref<1x1x1xf32, #tpu.memory_space<vmem>>, vector<1x1x1xf32>
      tpu.vector_store %arg4[%c0_19, %c0_20, %c0_21], %37 {strides = array<i32>} : memref<1x1x1xf32, #tpu.memory_space<vmem>>, vector<1x1x1xf32>,
    } else {
    }
    return
  }
  func.func @transform_0(%arg0: i32, %arg1: i32) -> (i32, i32) {
    %c1_i32 = arith.constant 1 : i32
    %0 = arith.muli %arg0, %c1_i32 : i32
    %1 = arith.addi %0, %arg1 : i32
    %c0_i32 = arith.constant 0 : i32
    %2 = arith.minsi %1, %c0_i32 : i32
    %c0_i32_0 = arith.constant 0 : i32
    %c0_i32_1 = arith.constant 0 : i32
    return %2, %c0_i32_0 : i32, i32
  }
  func.func @transform_1(%arg0: i32, %arg1: i32) -> (i32, i32) {
    %c1_i32 = arith.constant 1 : i32
    %0 = arith.muli %arg0, %c1_i32 : i32
    %1 = arith.addi %0, %arg1 : i32
    %c0_i32 = arith.constant 0 : i32
    %2 = arith.minsi %1, %c0_i32 : i32
    %c0_i32_0 = arith.constant 0 : i32
    %c0_i32_1 = arith.constant 0 : i32
    return %2, %c0_i32_0 : i32, i32
  }
  func.func @transform_2(%arg0: i32, %arg1: i32) -> (i32, i32, i32) {
    %c0_i32 = arith.constant 0 : i32
    %c0_i32_0 = arith.constant 0 : i32
    %c0_i32_1 = arith.constant 0 : i32
    return %arg0, %c0_i32, %c0_i32_0 : i32, i32, i32
  }
}

</mosaic_0001>

<llo_original>
// kernel: tpu_custom_call.1
$region0: #{tpu_custom_call.1}
  #allocation0 [shape = 'u32[]', space=smem, size = 0x4, offset = 0x4, fixed_abs, tag = 'smem constant byte address 0x4 - core index']
  #allocation1 [shape = 'u32[144,128]{1,0:T(1,128)}', space=vmem, size = 0x12000, scoped, tag = 'internal scratch']
  #allocation2 [shape = 'f32[8,128]{1,0:T(8,128)}', space=vmem, size = 0x1000, scoped, tag = 'scratch operand']
  %s0 = inlined_call_operand.hbm [shape: f32[16,128], index: 0, kind: input, shape index: {}]
  %s1 = inlined_call_operand.hbm [shape: f32[16,128], index: 1, kind: input, shape index: {}]
  %s2 = inlined_call_operand.vmem [shape: f32[2,1,1], index: 2, kind: output, shape index: {}]
  %s3 = sld [smem:[#allocation0]]
  $region57: #{tpu_custom_call.1} parent=0
    _
  %s5 = ssub.s32 1, %s3
  %s6 = scalar_select 0, %s5, %s3
  $region1: #{tpu_custom_call.1} parent=0
    #allocation3 [shape = 'u8[16384]{0}', space=vmem, size = 0x4000, scoped, tag = 'input window, operand 0']
    #allocation4 [shape = 's32[2]{0}', space=sflag, size = 0x8, scoped, tag = 'scoped memory for tpu_custom_call.1']
    #allocation5 [shape = 'u8[16384]{0}', space=vmem, size = 0x4000, scoped, tag = 'input window, operand 1']
    #allocation6 [shape = 's32[2]{0}', space=sflag, size = 0x8, scoped, tag = 'scoped memory for tpu_custom_call.1']
    %7 = vsyncpa [#allocation4], 0
    %s8 = scalar_lea.sflag [#allocation4], 1
    %9 = vsyncpa %s8, 0
    %10 = vsyncpa [#allocation6], 0
    %s11 = scalar_lea.sflag [#allocation6], 1
    %12 = vsyncpa %s11, 0
    loop: start=0, step=1, limit=4
    $region2: #{tpu_custom_call.1} parent=1 // loop_pre_header
      _
    $region3: #{tpu_custom_call.1} parent=1 // loop_header
      %s14 = sphi 0, %s18
      %p15 = scmp.ge.s32.totalorder %s14, 4
      %s21 = sphi 0, %s33
      %s22 = sphi 0, %s29
      %s23 = sphi 0, %s21
      %s24 = sphi 0, %s22
      %s25 = sphi 0, %s23
      %s26 = sphi 0, %s24
      %s42 = sphi 0, %s44
      %s45 = sphi 0, %s42
      %s46 = sphi 0, %s45
      %s62 = sphi 0, %s46
      %s74 = sphi 0, %s76
      %s77 = sphi 0, %s74
      %s78 = sphi 0, %s77
      %s94 = sphi 0, %s78
      %s100 = sphi 0, %s102
      %s103 = sphi 0, %s100
      %s104 = sphi 0, %s103
      %s120 = sphi 0, %s104
    $region4: #{tpu_custom_call.1} parent=1 // loop_header_branch
      %17 = sbr.rel (%p15) target = $region8
    $region5: #{tpu_custom_call.1} parent=1 // loop_body
      %s19 = ssub.s32 %s14, 1
      %s20 = ssub.s32 %s14, 2
      %s27 = sadd.s32 1, %s22
      %p28 = scmp.ge.s32.totalorder %s27, 1
      %s29 = scalar_select %p28, 0, %s27
      %s30 = sadd.s32 1, %s21
      %s31 = scalar_select %p28, %s30, %s21
      %p32 = scmp.ge.s32.totalorder %s31, 2
      %s33 = scalar_select %p32, 0, %s31
      %s34 = sadd.s32 %s21, %s22
      %p35 = scmp.lt.s32.totalorder %s34, 0
      %s36 = scalar_select %p35, %s34, 0
      %s37 = sadd.s32 %s33, %s29
      %p38 = scmp.lt.s32.totalorder %s37, 0
      %s39 = scalar_select %p38, %s37, 0
      %s40 = ssub.s32 %s36, %s39
      %p41 = scmp.eq.s32.totalorder %s40, 0
      %s43 = sadd.s32 %s42, 1
      %s44 = scalar_select %p41, %s42, %s43
      %p47 = pneg %p41
      %p48 = scmp.eq.s32.totalorder %s14, 1
      %p49 = por %p47, %p48
      %p50 = scmp.ne.s32.totalorder %s42, %s45
      %p51 = scmp.eq.s32.totalorder %s14, 0
      %p52 = por %p50, %p51
      %p53 = scmp.ne.s32.totalorder %s42, %s45
      %p54 = scmp.eq.s32.totalorder %s19, 1
      %p55 = por %p53, %p54
      %p56 = scmp.ne.s32.totalorder %s45, %s46
      %p57 = scmp.eq.s32.totalorder %s19, 0
      %p58 = por %p56, %p57
      %p59 = scmp.ne.s32.totalorder %s45, %s46
      %p60 = scmp.eq.s32.totalorder %s20, 1
      %p61 = por %p59, %p60
      %p63 = scmp.ne.s32.totalorder %s46, %s62
      %p64 = scmp.eq.s32.totalorder %s20, 0
      %p65 = por %p63, %p64
      %s66 = sadd.s32 %s21, %s22
      %p67 = scmp.lt.s32.totalorder %s66, 0
      %s68 = scalar_select %p67, %s66, 0
      %s69 = sadd.s32 %s33, %s29
      %p70 = scmp.lt.s32.totalorder %s69, 0
      %s71 = scalar_select %p70, %s69, 0
      %s72 = ssub.s32 %s68, %s71
      %p73 = scmp.eq.s32.totalorder %s72, 0
      %s75 = sadd.s32 %s74, 1
      %s76 = scalar_select %p73, %s74, %s75
      %p79 = pneg %p73
      %p80 = scmp.eq.s32.totalorder %s14, 1
      %p81 = por %p79, %p80
      %p82 = scmp.ne.s32.totalorder %s74, %s77
      %p83 = scmp.eq.s32.totalorder %s14, 0
      %p84 = por %p82, %p83
      %p85 = scmp.ne.s32.totalorder %s74, %s77
      %p86 = scmp.eq.s32.totalorder %s19, 1
      %p87 = por %p85, %p86
      %p88 = scmp.ne.s32.totalorder %s77, %s78
      %p89 = scmp.eq.s32.totalorder %s19, 0
      %p90 = por %p88, %p89
      %p91 = scmp.ne.s32.totalorder %s77, %s78
      %p92 = scmp.eq.s32.totalorder %s20, 1
      %p93 = por %p91, %p92
      %p95 = scmp.ne.s32.totalorder %s78, %s94
      %p96 = scmp.eq.s32.totalorder %s20, 0
      %p97 = por %p95, %p96
      %s98 = ssub.s32 %s21, %s33
      %p99 = scmp.eq.s32.totalorder %s98, 0
      %s101 = sadd.s32 %s100, 1
      %s102 = scalar_select %p99, %s100, %s101
      %p105 = pneg %p99
      %p106 = scmp.eq.s32.totalorder %s14, 1
      %p107 = por %p105, %p106
      %p108 = scmp.ne.s32.totalorder %s100, %s103
      %p109 = scmp.eq.s32.totalorder %s14, 0
      %p110 = por %p108, %p109
      %p111 = scmp.ne.s32.totalorder %s100, %s103
      %p112 = scmp.eq.s32.totalorder %s19, 1
      %p113 = por %p111, %p112
      %p114 = scmp.ne.s32.totalorder %s103, %s104
      %p115 = scmp.eq.s32.totalorder %s19, 0
      %p116 = por %p114, %p115
      %p117 = scmp.ne.s32.totalorder %s103, %s104
      %p118 = scmp.eq.s32.totalorder %s20, 1
      %p119 = por %p117, %p118
      %p121 = scmp.ne.s32.totalorder %s104, %s120
      %p122 = scmp.eq.s32.totalorder %s20, 0
      %p123 = por %p121, %p122
      %p124 = scmp.le.s32.totalorder 1, %s14
      %p125 = scmp.lt.s32.totalorder %s14, 3
      %p126 = pnand %p124, %p125
      %p127 = pneg %p126
      // Predicated region
      $region9: #{tpu_custom_call.1} parent=5 // pred_check
        _
      $region10: #{tpu_custom_call.1} parent=5 // pred_check_branch
        %129 = sbr.rel (%p126) target = $region12
      $region11: #{tpu_custom_call.1} parent=5 // pred_region
        %s130 = ssub.s32 %s14, 1
      $region12: #{tpu_custom_call.1} parent=5 // pred_fallthru
        _
      %p131 = scmp.lt.s32.totalorder %s14, 2
      // Predicated region
      $region13: #{tpu_custom_call.1} parent=5 // pred_check
        %p132 = pneg %p131
      $region14: #{tpu_custom_call.1} parent=5 // pred_check_branch
        %134 = sbr.rel (%p132) target = $region16
      $region15: #{tpu_custom_call.1} parent=5 // pred_region
        // Predicated region
        $region17: #{tpu_custom_call.1} parent=15 // pred_check
          %p135 = pneg %p52
        $region18: #{tpu_custom_call.1} parent=15 // pred_check_branch
          %137 = sbr.rel (%p135) target = $region20
        $region19: #{tpu_custom_call.1} parent=15 // pred_region
          %s138 = sand.u32 %s42, 1
          %s139 = scalar_lea.sflag [#allocation4], %s138
          %s140 = sand.u32 %s42, 1
          %s141 = smul.addr %s140, 16
          %s142 = scalar_lea.vmem [#allocation3], %s141
          %s143 = sadd.s32 %s21, %s22
          %p144 = scmp.lt.s32.totalorder %s143, 0
          %s145 = scalar_select %p144, %s143, 0
          %s146 = smul.u32 2, %s145
          %s148 = ssub.s32 256, 256
          %149 = vsyncadd %s139, %s148
          %s150 = smul.addr %s146, 128
          %s151 = scalar_lea.hbm %s0, %s150
          %s152 = sshll.u32 %s142, 4
          %s153 = int_to_ptr.vmem [resolvable:$true] %s152
          %158 = dma.hbm_to_vmem [thread:$0]  %s151, 256, %s153, %s139, 128, 128, 8
        $region20: #{tpu_custom_call.1} parent=15 // pred_fallthru
          _
        // Predicated region
        $region21: #{tpu_custom_call.1} parent=15 // pred_check
          %p159 = pneg %p84
        $region22: #{tpu_custom_call.1} parent=15 // pred_check_branch
          %161 = sbr.rel (%p159) target = $region24
        $region23: #{tpu_custom_call.1} parent=15 // pred_region
          %s162 = sand.u32 %s74, 1
          %s163 = scalar_lea.sflag [#allocation6], %s162
          %s164 = sand.u32 %s74, 1
          %s165 = smul.addr %s164, 16
          %s166 = scalar_lea.vmem [#allocation5], %s165
          %s167 = sadd.s32 %s21, %s22
          %p168 = scmp.lt.s32.totalorder %s167, 0
          %s169 = scalar_select %p168, %s167, 0
          %s170 = smul.u32 2, %s169
          %s172 = ssub.s32 256, 256
          %173 = vsyncadd %s163, %s172
          %s174 = smul.addr %s170, 128
          %s175 = scalar_lea.hbm %s1, %s174
          %s176 = sshll.u32 %s166, 4
          %s177 = int_to_ptr.vmem [resolvable:$true] %s176
          %182 = dma.hbm_to_vmem [thread:$0]  %s175, 256, %s177, %s163, 128, 128, 8
        $region24: #{tpu_custom_call.1} parent=15 // pred_fallthru
          _
      $region16: #{tpu_custom_call.1} parent=5 // pred_fallthru
        _
      %p183 = scmp.le.s32.totalorder 1, %s14
      %p184 = scmp.lt.s32.totalorder %s14, 3
      %p185 = pnand %p183, %p184
      %p186 = pneg %p185
      // Predicated region
      $region25: #{tpu_custom_call.1} parent=5 // pred_check
        _
      $region26: #{tpu_custom_call.1} parent=5 // pred_check_branch
        %188 = sbr.rel (%p185) target = $region28
      $region27: #{tpu_custom_call.1} parent=5 // pred_region
        %s189 = ssub.s32 %s14, 1
        %s190 = sand.u32 %s45, 1
        %s191 = scalar_lea.sflag [#allocation4], %s190
        %s192 = sand.u32 %s45, 1
        %s193 = smul.addr %s192, 16
        %s194 = scalar_lea.vmem [#allocation3], %s193
        // Predicated region
        $region29: #{tpu_custom_call.1} parent=27 // pred_check
          %p195 = pneg %p58
        $region30: #{tpu_custom_call.1} parent=27 // pred_check_branch
          %197 = sbr.rel (%p195) target = $region32
        $region31: #{tpu_custom_call.1} parent=27 // pred_region
          %198 = dma.done %s191, 256
        $region32: #{tpu_custom_call.1} parent=27 // pred_fallthru
          _
        %s199 = sand.u32 %s77, 1
        %s200 = scalar_lea.sflag [#allocation6], %s199
        %s201 = sand.u32 %s77, 1
        %s202 = smul.addr %s201, 16
        %s203 = scalar_lea.vmem [#allocation5], %s202
        // Predicated region
        $region33: #{tpu_custom_call.1} parent=27 // pred_check
          %p204 = pneg %p90
        $region34: #{tpu_custom_call.1} parent=27 // pred_check_branch
          %206 = sbr.rel (%p204) target = $region36
        $region35: #{tpu_custom_call.1} parent=27 // pred_region
          %207 = dma.done %s200, 256
        $region36: #{tpu_custom_call.1} parent=27 // pred_fallthru
          _
        %s208 = sand.u32 %s45, 1
        %s209 = scalar_lea.sflag [#allocation4], %s208
        %s210 = sand.u32 %s45, 1
        %s211 = smul.addr %s210, 16
        %s212 = scalar_lea.vmem [#allocation3], %s211
        %p213 = pneg %p58
        %p214 = pneg %p55
        %s215 = sand.u32 %s77, 1
        %s216 = scalar_lea.sflag [#allocation6], %s215
        %s217 = sand.u32 %s77, 1
        %s218 = smul.addr %s217, 16
        %s219 = scalar_lea.vmem [#allocation5], %s218
        %p220 = pneg %p90
        %p221 = pneg %p87
        %p222 = pneg %p116
        %p223 = pneg %p113
        %p224 = scmp.lt.s32.totalorder %s23, 1
        %s225 = scalar_select %p224, %s23, 1
        %s226 = scalar_lea.vmem %s2, %s225
        %s227 = sadd.s32 %s23, %s24
        %p228 = scmp.lt.s32.totalorder %s227, 0
        %s229 = scalar_select %p228, %s227, 0
        %s230 = smul.u32 2, %s229
        %s231 = sadd.s32 %s23, %s24
        %p232 = scmp.lt.s32.totalorder %s231, 0
        %s233 = scalar_select %p232, %s231, 0
        %s234 = smul.u32 2, %s233
        %p235 = scmp.lt.s32.totalorder %s23, 1
        %s236 = scalar_select %p235, %s23, 1
        %s237 = scalar_lea.vmem %s2, %s236
        %p238 = scmp.eq.s32.totalorder %s24, 0
        // Predicated region
        $region37: #{tpu_custom_call.1} parent=27 // pred_check
          %p239 = pneg %p238
        $region38: #{tpu_custom_call.1} parent=27 // pred_check_branch
          %241 = sbr.rel (%p239) target = $region40
        $region39: #{tpu_custom_call.1} parent=27 // pred_region
          %242 = vst [vmem:[#allocation2] sm:$0xff] 0.0
        $region40: #{tpu_custom_call.1} parent=27 // pred_fallthru
          _
        %v243 = vld [vmem:[%s194] sm:$0xff]
        %v244 = vld [vmem:[%s194 + $0x8] sm:$0xff]
        %v245 = vld [vmem:[%s203] sm:$0xff]
        %v246 = vld [vmem:[%s203 + $0x8] sm:$0xff]
        %v247 = vsub.f32 %v243, %v245
        %v248 = vsub.f32 %v244, %v246
        %v249 = vmul.f32 %v247, %v247
        %v250 = vmul.f32 %v248, %v248
        %v251 = vmax.f32 %v249, 0.001
        %v252 = vmax.f32 %v250, 0.001
        %s253 = sadd.s32 %s23, %s24
        %p254 = scmp.lt.s32.totalorder %s253, 0
        %p255 = scmp.eq.s32.totalorder %s253, 0
        %s256 = scalar_select %p255, 2048, 0
        %s257 = scalar_select %p254, 2048, %s256
        %v258 = vlaneseq
        %v259 = vshrl.u32 %v258, 7
        %v260 = vadd.s32 %v259, 8
        %v261 = vmul.u32 %v259, 128
        %v262 = vmul.u32 %v260, 128
        %v263 = vlaneseq
        %v264 = vand.u32 %v263, 127
        %v265 = vadd.s32 %v261, %v264
        %v266 = vadd.s32 %v262, %v264
        %v267 = vstv %s257
        %vm268 = vcmp.lt.s32.totalorder %v265, %v267
        %vm269 = vcmp.lt.s32.totalorder %v266, %v267
        %v270 = vsel %vm268, %v251, 0.0
        %v271 = vsel %vm269, %v252, 0.0
        %v272 = vld [vmem:[#allocation2] sm:$0xff]
        %v273 = vadd.f32 %v270, %v271
        %v274 = vadd.f32 %v272, %v273
        %275 = vst [vmem:[#allocation2] sm:$0xff] %v274
        // Predicated region
        $region41: #{tpu_custom_call.1} parent=27 // pred_check
          %p276 = pneg %p238
        $region42: #{tpu_custom_call.1} parent=27 // pred_check_branch
          %278 = sbr.rel (%p276) target = $region44
        $region43: #{tpu_custom_call.1} parent=27 // pred_region
          %v279 = vld [vmem:[#allocation2] sm:$0xff]
          %280 = vadd.xlane.f32.xlu0 %v279
          %v281 = vpop.xlane.xlu0 %280
          %v282 = vrot.slane %v281, 4
          %v283 = vadd.f32 %v281, %v282
          %v284 = vrot.slane %v283, 2
          %v285 = vadd.f32 %v283, %v284
          %v286 = vrot.slane %v285, 1
          %v287 = vadd.f32 %v285, %v286
          %s288 = vtos %v287
          %v289 = vstv %s288
          %vm290 = vcmask 0
          %291 = vst.msk [vmem:[%s237] sm:$0x1] %vm290, %v289
        $region44: #{tpu_custom_call.1} parent=27 // pred_fallthru
          _
        %p292 = scmp.lt.s32.totalorder %s23, 1
        %s293 = scalar_select %p292, %s23, 1
        %s294 = scalar_lea.vmem %s2, %s293
        // Predicated region
        $region45: #{tpu_custom_call.1} parent=27 // pred_check
          %p295 = pneg %p113
        $region46: #{tpu_custom_call.1} parent=27 // pred_check_branch
          %297 = sbr.rel (%p295) target = $region48
        $region47: #{tpu_custom_call.1} parent=27 // pred_region
          _
        $region48: #{tpu_custom_call.1} parent=27 // pred_fallthru
          _
      $region28: #{tpu_custom_call.1} parent=5 // pred_fallthru
        _
      %p298 = scmp.le.s32.totalorder 2, %s14
      // Predicated region
      $region49: #{tpu_custom_call.1} parent=5 // pred_check
        %p299 = pneg %p298
      $region50: #{tpu_custom_call.1} parent=5 // pred_check_branch
        %301 = sbr.rel (%p299) target = $region52
      $region51: #{tpu_custom_call.1} parent=5 // pred_region
        %s302 = ssub.s32 %s14, 2
        // Predicated region
        $region53: #{tpu_custom_call.1} parent=51 // pred_check
          %p303 = pneg %p119
        $region54: #{tpu_custom_call.1} parent=51 // pred_check_branch
          %305 = sbr.rel (%p303) target = $region56
        $region55: #{tpu_custom_call.1} parent=51 // pred_region
          %p306 = scmp.lt.s32.totalorder %s25, 1
          %s307 = scalar_select %p306, %s25, 1
          %s308 = scalar_lea.vmem %s2, %s307
        $region56: #{tpu_custom_call.1} parent=51 // pred_fallthru
          _
      $region52: #{tpu_custom_call.1} parent=5 // pred_fallthru
        _
    $region6: #{tpu_custom_call.1} parent=1 // loop_footer
      %s18 = sadd.s32 1, %s14
    $region7: #{tpu_custom_call.1} parent=1 // loop_footer_branch
      %13 = sbr.rel target = $region3
    $region8: #{tpu_custom_call.1} parent=1 // loop_exit
      _
    %309 = vsyncpa [#allocation4], 1
    %s310 = scalar_lea.sflag [#allocation4], 1
    %311 = vsyncpa %s310, 1
    %312 = vsyncpa [#allocation6], 1
    %s313 = scalar_lea.sflag [#allocation6], 1
    %314 = vsyncpa %s313, 1

</llo_original>
